<compile_context>
chip_gen: v6e
topology: v6e:2x2x1
jax: 0.10.0
libtpu: 0.0.40
codegen_flags: <defaults>
</compile_context>

<pallas_src>
import functools

import jax
import jax.numpy as jnp
from jax.experimental import pallas as pl
from jax.experimental.pallas import tpu as pltpu


def _round_up(x, m):
    return (x + m - 1) // m * m


def _matmul_bias_kernel(a_ref, w_ref, b_ref, o_ref):
    # bf16 x bf16 -> f32 accumulate on the MXU, bias add in f32, f32 out.
    acc = jnp.dot(a_ref[...], w_ref[...], preferred_element_type=jnp.float32)
    o_ref[...] = (acc + b_ref[...]).astype(o_ref.dtype)


def _pallas_matmul_bias(a, w_p, b_p, *, block_m=None):
    """a @ w_p + b_p with a Pallas kernel.

    a:   (M, K)  float32 (cast to bf16 here; K is padded up to Kp).
    w_p: (Kp, Np) bfloat16, pre-padded (hoisted out of the per-call path).
    b_p: (1, Np)  float32,  pre-padded.
    Returns (M, Np) float32.
    """
    M, K = a.shape
    Kp, Np = w_p.shape
    assert K <= Kp

    if block_m is None:
        # Collapse the M grid: one step if the whole (8-aligned) M fits,
        # otherwise fall back to 512-row tiles.
        m8 = _round_up(M, 8)
        block_m = m8 if m8 <= 2048 else 512
    Mp = _round_up(M, block_m)

    a_p = jnp.pad(a.astype(jnp.bfloat16), ((0, Mp - M), (0, Kp - K)))

    grid = (Mp // block_m,)
    out_p = pl.pallas_call(
        _matmul_bias_kernel,
        out_shape=jax.ShapeDtypeStruct((Mp, Np), jnp.float32),
        grid=grid,
        in_specs=[
            pl.BlockSpec((block_m, Kp), lambda i: (i, 0)),
            pl.BlockSpec((Kp, Np), lambda i: (0, 0)),
            pl.BlockSpec((1, Np), lambda i: (0, 0)),
        ],
        out_specs=pl.BlockSpec((block_m, Np), lambda i: (i, 0)),
        compiler_params=pltpu.CompilerParams(
            dimension_semantics=("parallel",)
        ),
    )(a_p, w_p, b_p)

    return out_p[:M, :]


def prepare_weights(params, *, kernel_size=3):
    """One-time weight/bias prep (hoisted out of the per-call forward path).

    params: dict with w1,w2,w3: (out, inp, kh, kw) and b1,b2,b3: (out,).
    Returns (w_p, b_p, n_out):
      w_p: (Kp, Np) bfloat16  where K = kh*kw*inp  (column order kh, kw, c),
      b_p: (1, Np)  float32,
      n_out = 3*out.
    """
    kh = kw = kernel_size
    out_ch, inp = params["w1"].shape[0], params["w1"].shape[1]
    K = kh * kw * inp
    n_out = 3 * out_ch

    def flat(w):
        # (out, inp, kh, kw) -> (kh, kw, inp, out) -> (K, out); row order
        # (kh, kw, c) matches the NHWC im2col column order below.
        return jnp.transpose(w, (2, 3, 1, 0)).reshape(K, out_ch)

    w_cat = jnp.concatenate(
        [flat(params["w1"]), flat(params["w2"]), flat(params["w3"])], axis=1)
    b_cat = jnp.concatenate([params["b1"], params["b2"], params["b3"]])

    Kp = _round_up(K, 128)
    Np = _round_up(n_out, 128)
    w_p = jnp.pad(w_cat, ((0, Kp - K), (0, Np - n_out))).astype(jnp.bfloat16)
    b_p = jnp.pad(b_cat, (0, Np - n_out)).reshape(1, Np).astype(jnp.float32)
    return w_p, b_p, n_out


def test_concat_many_forward(x, w_p, b_p, *, n_out, kernel_size=3):
    """Equivalent of TestConcatMany.forward.

    x: (N, inp, H, W) float32, NCHW.  Returns (N, 3*out, OH, OW) float32.
    """
    kh = kw = kernel_size
    n, c, h, w = x.shape
    oh, ow = h - kh + 1, w - kw + 1

    # Lightweight im2col: NHWC shifted views concatenated on the channel axis
    # (column order kh, kw, c) — avoids the old stack/stack/6-D transpose.
    x_nhwc = jnp.transpose(x, (0, 2, 3, 1))                    # (N, H, W, C)
    cols = [x_nhwc[:, i:i + oh, j:j + ow, :]
            for i in range(kh) for j in range(kw)]
    a = jnp.concatenate(cols, axis=-1).reshape(n * oh * ow, kh * kw * c)

    y = _pallas_matmul_bias(a, w_p, b_p)                        # (M, Np) f32
    y = y[:, :n_out].reshape(n, oh, ow, n_out)
    return jnp.transpose(y, (0, 3, 1, 2))                       # NCHW


def _reference_forward(x, params):
    """Pure-JAX f32 reference using lax.conv for correctness checking."""
    def conv(x, w, b):
        y = jax.lax.conv_general_dilated(
            x, w, window_strides=(1, 1), padding="VALID",
            dimension_numbers=("NCHW", "OIHW", "NCHW"))
        return y + b[None, :, None, None]
    return jnp.concatenate(
        [conv(x, params["w1"], params["b1"]),
         conv(x, params["w2"], params["b2"]),
         conv(x, params["w3"], params["b3"])], axis=1)


def make_params(key, inp=10, out=16, kernel_size=3):
    """Deterministic parameter init (shapes match nn.Conv2d(inp, out, k))."""
    ks = jax.random.split(key, 6)
    scale = 1.0 / jnp.sqrt(inp * kernel_size * kernel_size)
    shape_w = (out, inp, kernel_size, kernel_size)
    return {
        "w1": jax.random.uniform(ks[0], shape_w, jnp.float32, -scale, scale),
        "b1": jax.random.uniform(ks[1], (out,), jnp.float32, -scale, scale),
        "w2": jax.random.uniform(ks[2], shape_w, jnp.float32, -scale, scale),
        "b2": jax.random.uniform(ks[3], (out,), jnp.float32, -scale, scale),
        "w3": jax.random.uniform(ks[4], shape_w, jnp.float32, -scale, scale),
        "b3": jax.random.uniform(ks[5], (out,), jnp.float32, -scale, scale),
    }


if __name__ == "__main__":
    key = jax.random.PRNGKey(0)
    k_x, k_p = jax.random.split(key)

    # Shapes consistent with the module defaults: batch=2, inp=10, spatial=16.
    N, INP, H, W = 2, 10, 16, 16
    OUT, K = 16, 3

    x = jax.random.normal(k_x, (N, INP, H, W), jnp.float32)
    params = make_params(k_p, inp=INP, out=OUT, kernel_size=K)

    # Hoisted one-time weight prep (params are static between forward calls).
    w_p, b_p, n_out = prepare_weights(params, kernel_size=K)

    fwd = jax.jit(functools.partial(
        test_concat_many_forward, n_out=n_out, kernel_size=K))
    y = fwd(x, w_p, b_p)
    jax.block_until_ready(y)

    assert y.shape == (N, 3 * OUT, H - K + 1, W - K + 1), y.shape

    # Sanity check against a pure-JAX f32 conv reference (kernel computes in
    # bf16 on the MXU, so tolerance is relaxed accordingly).
    y_ref = _reference_forward(x, params)
    assert jnp.allclose(y, y_ref, atol=3e-2, rtol=3e-2), \
        float(jnp.max(jnp.abs(y - y_ref)))

    print("KERNEL_OK")
</pallas_src>

<mosaic_0001>
module attributes {stable_mosaic.version = 11 : i64} {
  func.func @_matmul_bias_kernel(%arg0: i32, %arg1: memref<392x128xbf16, #tpu.memory_space<vmem>>, %arg2: memref<128x128xbf16, #tpu.memory_space<vmem>>, %arg3: memref<1x128xf32, #tpu.memory_space<vmem>>, %arg4: memref<392x128xf32, #tpu.memory_space<vmem>>) attributes {dimension_semantics = [#tpu.dimension_semantics<parallel>], iteration_bounds = array<i64: 1>, scalar_prefetch = 0 : i64, scratch_operands = 0 : i64, tpu.core_type = #tpu.core_type<tc>, window_params = [{transform_indices = @transform_0, window_bounds = array<i64: 392, 128>}, {pipeline_mode = #tpu.pipeline_mode<synchronous>, transform_indices = @transform_1, window_bounds = array<i64: 128, 128>}, {pipeline_mode = #tpu.pipeline_mode<synchronous>, transform_indices = @transform_2, window_bounds = array<i64: 1, 128>}, {transform_indices = @transform_3, window_bounds = array<i64: 392, 128>}]} {
    %c0 = arith.constant 0 : index
    %c0_0 = arith.constant 0 : index
    %0 = vector.load %arg1[%c0, %c0_0] : memref<392x128xbf16, #tpu.memory_space<vmem>>, vector<392x128xbf16>
    %c0_1 = arith.constant 0 : index
    %c0_2 = arith.constant 0 : index
    %1 = vector.load %arg2[%c0_1, %c0_2] : memref<128x128xbf16, #tpu.memory_space<vmem>>, vector<128x128xbf16>
    %cst = arith.constant dense<0.000000e+00> : vector<392x128xf32>
    %2 = tpu.matmul %0, %1, %cst {dimension_numbers = #tpu.dot_dimension_numbers<[1], [0], [0], [1], [0, 0, 1, 1], [], []>} : vector<392x128xbf16>, vector<128x128xbf16>, vector<392x128xf32> -> vector<392x128xf32>
    %c0_3 = arith.constant 0 : index
    %c0_4 = arith.constant 0 : index
    %3 = vector.load %arg3[%c0_3, %c0_4] : memref<1x128xf32, #tpu.memory_space<vmem>>, vector<1x128xf32>
    %4 = vector.broadcast %3 : vector<1x128xf32> to vector<392x128xf32>
    %5 = arith.addf %2, %4 : vector<392x128xf32>
    %c0_5 = arith.constant 0 : index
    %c0_6 = arith.constant 0 : index
    %6 = vector.load %arg4[%c0_5, %c0_6] : memref<392x128xf32, #tpu.memory_space<vmem>>, vector<392x128xf32>
    tpu.vector_store %arg4[%c0_5, %c0_6], %5 {strides = array<i32>} : memref<392x128xf32, #tpu.memory_space<vmem>>, vector<392x128xf32>,
    return
  }
  func.func @transform_0(%arg0: i32) -> (i32, i32) {
    %c0_i32 = arith.constant 0 : i32
    %c0_i32_0 = arith.constant 0 : i32
    return %arg0, %c0_i32 : i32, i32
  }
  func.func @transform_1(%arg0: i32) -> (i32, i32) {
    %c0_i32 = arith.constant 0 : i32
    %c0_i32_0 = arith.constant 0 : i32
    %c0_i32_1 = arith.constant 0 : i32
    return %c0_i32, %c0_i32_0 : i32, i32
  }
  func.func @transform_2(%arg0: i32) -> (i32, i32) {
    %c0_i32 = arith.constant 0 : i32
    %c0_i32_0 = arith.constant 0 : i32
    %c0_i32_1 = arith.constant 0 : i32
    return %c0_i32, %c0_i32_0 : i32, i32
  }
  func.func @transform_3(%arg0: i32) -> (i32, i32) {
    %c0_i32 = arith.constant 0 : i32
    %c0_i32_0 = arith.constant 0 : i32
    return %arg0, %c0_i32 : i32, i32
  }
}

</mosaic_0001>

<llo_original>
// kernel: test_concat_many_forward.1
$region0: #{test_concat_many_forward.1}
  #allocation0 [shape = 'u32[]', space=smem, size = 0x4, offset = 0x4, fixed_abs, tag = 'smem constant byte address 0x4 - core index']
  #allocation1 [shape = 'u32[144,128]{1,0:T(1,128)}', space=vmem, size = 0x12000, scoped, tag = 'internal scratch']
  %s0 = inlined_call_operand.vmem [shape: bf16[392,128], index: 0, kind: input, shape index: {}]
  %s1 = inlined_call_operand.vmem [shape: bf16[128,128], index: 1, kind: input, shape index: {}]
  %s2 = inlined_call_operand.vmem [shape: f32[1,128], index: 2, kind: input, shape index: {}]
  %s3 = inlined_call_operand.vmem [shape: f32[392,128], index: 3, kind: output, shape index: {}]
  %s4 = sld [smem:[#allocation0]]
  $region22: #{test_concat_many_forward.1} parent=0
    _
  %s6 = ssub.s32 1, %s4
  %s7 = scalar_select 0, %s6, %s4
  // Predicated region
  $region2: #{test_concat_many_forward.1} parent=0 // pred_check
    _
  $region3: #{test_concat_many_forward.1} parent=0 // pred_check_branch
    %9 = sbr.rel (0) target = $region5
  $region4: #{test_concat_many_forward.1} parent=0 // pred_region
    _
  $region5: #{test_concat_many_forward.1} parent=0 // pred_fallthru
    _
  // Predicated region
  $region6: #{test_concat_many_forward.1} parent=0 // pred_check
    _
  $region7: #{test_concat_many_forward.1} parent=0 // pred_check_branch
    %11 = sbr.rel (0) target = $region9
  $region8: #{test_concat_many_forward.1} parent=0 // pred_region
    _
  $region9: #{test_concat_many_forward.1} parent=0 // pred_fallthru
    _
  // Predicated region
  $region10: #{test_concat_many_forward.1} parent=0 // pred_check
    _
  $region11: #{test_concat_many_forward.1} parent=0 // pred_check_branch
    %13 = sbr.rel (0) target = $region13
  $region12: #{test_concat_many_forward.1} parent=0 // pred_region
    _
  $region13: #{test_concat_many_forward.1} parent=0 // pred_fallthru
    _
  %v15 = vld [vmem:[%s0] sm:$0xf]
  %v16 = vld [vmem:[%s0 + $0x4] sm:$0xf]
  %v17 = vld [vmem:[%s0 + $0x8] sm:$0xf]
  %v18 = vld [vmem:[%s0 + $0xc] sm:$0xf]
  %v19 = vld [vmem:[%s0 + $0x10] sm:$0xf]
  %v20 = vld [vmem:[%s0 + $0x14] sm:$0xf]
  %v21 = vld [vmem:[%s0 + $0x18] sm:$0xf]
  %v22 = vld [vmem:[%s0 + $0x1c] sm:$0xf]
  %v23 = vld [vmem:[%s0 + $0x20] sm:$0xf]
  %v24 = vld [vmem:[%s0 + $0x24] sm:$0xf]
  %v25 = vld [vmem:[%s0 + $0x28] sm:$0xf]
  %v26 = vld [vmem:[%s0 + $0x2c] sm:$0xf]
  %v27 = vld [vmem:[%s0 + $0x30] sm:$0xf]
  %v28 = vld [vmem:[%s0 + $0x34] sm:$0xf]
  %v29 = vld [vmem:[%s0 + $0x38] sm:$0xf]
  %v30 = vld [vmem:[%s0 + $0x3c] sm:$0xf]
  %v31 = vld [vmem:[%s0 + $0x40] sm:$0xf]
  %v32 = vld [vmem:[%s0 + $0x44] sm:$0xf]
  %v33 = vld [vmem:[%s0 + $0x48] sm:$0xf]
  %v34 = vld [vmem:[%s0 + $0x4c] sm:$0xf]
  %v35 = vld [vmem:[%s0 + $0x50] sm:$0xf]
  %v36 = vld [vmem:[%s0 + $0x54] sm:$0xf]
  %v37 = vld [vmem:[%s0 + $0x58] sm:$0xf]
  %v38 = vld [vmem:[%s0 + $0x5c] sm:$0xf]
  %v39 = vld [vmem:[%s0 + $0x60] sm:$0xf]
  %v40 = vld [vmem:[%s0 + $0x64] sm:$0xf]
  %v41 = vld [vmem:[%s0 + $0x68] sm:$0xf]
  %v42 = vld [vmem:[%s0 + $0x6c] sm:$0xf]
  %v43 = vld [vmem:[%s0 + $0x70] sm:$0xf]
  %v44 = vld [vmem:[%s0 + $0x74] sm:$0xf]
  %v45 = vld [vmem:[%s0 + $0x78] sm:$0xf]
  %v46 = vld [vmem:[%s0 + $0x7c] sm:$0xf]
  %v47 = vld [vmem:[%s0 + $0x80] sm:$0xf]
  %v48 = vld [vmem:[%s0 + $0x84] sm:$0xf]
  %v49 = vld [vmem:[%s0 + $0x88] sm:$0xf]
  %v50 = vld [vmem:[%s0 + $0x8c] sm:$0xf]
  %v51 = vld [vmem:[%s0 + $0x90] sm:$0xf]
  %v52 = vld [vmem:[%s0 + $0x94] sm:$0xf]
  %v53 = vld [vmem:[%s0 + $0x98] sm:$0xf]
  %v54 = vld [vmem:[%s0 + $0x9c] sm:$0xf]
  %v55 = vld [vmem:[%s0 + $0xa0] sm:$0xf]
  %v56 = vld [vmem:[%s0 + $0xa4] sm:$0xf]
  %v57 = vld [vmem:[%s0 + $0xa8] sm:$0xf]
  %v58 = vld [vmem:[%s0 + $0xac] sm:$0xf]
  %v59 = vld [vmem:[%s0 + $0xb0] sm:$0xf]
  %v60 = vld [vmem:[%s0 + $0xb4] sm:$0xf]
  %v61 = vld [vmem:[%s0 + $0xb8] sm:$0xf]
  %v62 = vld [vmem:[%s0 + $0xbc] sm:$0xf]
  %v63 = vld [vmem:[%s0 + $0xc0] sm:$0xf]
  %v64 = vld [vmem:[%s1] sm:$0xf]
  %v65 = vld [vmem:[%s1 + $0x4] sm:$0xf]
  %v66 = vld [vmem:[%s1 + $0x8] sm:$0xf]
  %v67 = vld [vmem:[%s1 + $0xc] sm:$0xf]
  %v68 = vld [vmem:[%s1 + $0x10] sm:$0xf]
  %v69 = vld [vmem:[%s1 + $0x14] sm:$0xf]
  %v70 = vld [vmem:[%s1 + $0x18] sm:$0xf]
  %v71 = vld [vmem:[%s1 + $0x1c] sm:$0xf]
  %v72 = vld [vmem:[%s1 + $0x20] sm:$0xf]
  %v73 = vld [vmem:[%s1 + $0x24] sm:$0xf]
  %v74 = vld [vmem:[%s1 + $0x28] sm:$0xf]
  %v75 = vld [vmem:[%s1 + $0x2c] sm:$0xf]
  %v76 = vld [vmem:[%s1 + $0x30] sm:$0xf]
  %v77 = vld [vmem:[%s1 + $0x34] sm:$0xf]
  %v78 = vld [vmem:[%s1 + $0x38] sm:$0xf]
  %v79 = vld [vmem:[%s1 + $0x3c] sm:$0xf]
  %v80 = vld [vmem:[%s2] sm:$0x1]
  %v82 = vlaneseq
  %v83 = vshrl.u32 %v82, 7
  %v84 = vsub.s32 0, %v83
  %v85 = vrot.slane %v80, %v84
  %v136 = vunpack.c.l.b16 %v15
  %v137 = vunpack.c.l.b16 %v16
  %v138 = vunpack.c.l.b16 %v17
  %v139 = vunpack.c.l.b16 %v18
  %v140 = vunpack.c.l.b16 %v19
  %v141 = vunpack.c.l.b16 %v20
  %v142 = vunpack.c.l.b16 %v21
  %v143 = vunpack.c.l.b16 %v22
  %v144 = vunpack.c.l.b16 %v23
  %v145 = vunpack.c.l.b16 %v24
  %v146 = vunpack.c.l.b16 %v25
  %v147 = vunpack.c.l.b16 %v26
  %v148 = vunpack.c.l.b16 %v27
  %v149 = vunpack.c.l.b16 %v28
  %v150 = vunpack.c.l.b16 %v29
  %v151 = vunpack.c.l.b16 %v30
  %v152 = vunpack.c.l.b16 %v31
  %v153 = vunpack.c.l.b16 %v32
  %v154 = vunpack.c.l.b16 %v33
  %v155 = vunpack.c.l.b16 %v34
  %v156 = vunpack.c.l.b16 %v35
  %v157 = vunpack.c.l.b16 %v36
  %v158 = vunpack.c.l.b16 %v37
  %v159 = vunpack.c.l.b16 %v38
  %v160 = vunpack.c.l.b16 %v39
  %v161 = vunpack.c.l.b16 %v40
  %v162 = vunpack.c.l.b16 %v41
  %v163 = vunpack.c.l.b16 %v42
  %v164 = vunpack.c.l.b16 %v43
  %v165 = vunpack.c.l.b16 %v44
  %v166 = vunpack.c.l.b16 %v45
  %v167 = vunpack.c.l.b16 %v46
  %v168 = vunpack.c.l.b16 %v47
  %v169 = vunpack.c.l.b16 %v48
  %v170 = vunpack.c.l.b16 %v49
  %v171 = vunpack.c.l.b16 %v50
  %v172 = vunpack.c.l.b16 %v51
  %v173 = vunpack.c.l.b16 %v52
  %v174 = vunpack.c.l.b16 %v53
  %v175 = vunpack.c.l.b16 %v54
  %v176 = vunpack.c.l.b16 %v55
  %v177 = vunpack.c.l.b16 %v56
  %v178 = vunpack.c.l.b16 %v57
  %v179 = vunpack.c.l.b16 %v58
  %v180 = vunpack.c.l.b16 %v59
  %v181 = vunpack.c.l.b16 %v60
  %v182 = vunpack.c.l.b16 %v61
  %v183 = vunpack.c.l.b16 %v62
  %v184 = vunpack.c.l.b16 %v63
  %v185 = vpack.c.b16 %v137, %v136
  %v186 = vpack.c.b16 %v139, %v138
  %v187 = vpack.c.b16 %v141, %v140
  %v188 = vpack.c.b16 %v143, %v142
  %v189 = vpack.c.b16 %v145, %v144
  %v190 = vpack.c.b16 %v147, %v146
  %v191 = vpack.c.b16 %v149, %v148
  %v192 = vpack.c.b16 %v151, %v150
  %v193 = vpack.c.b16 %v153, %v152
  %v194 = vpack.c.b16 %v155, %v154
  %v195 = vpack.c.b16 %v157, %v156
  %v196 = vpack.c.b16 %v159, %v158
  %v197 = vpack.c.b16 %v161, %v160
  %v198 = vpack.c.b16 %v163, %v162
  %v199 = vpack.c.b16 %v165, %v164
  %v200 = vpack.c.b16 %v167, %v166
  %v201 = vpack.c.b16 %v169, %v168
  %v202 = vpack.c.b16 %v171, %v170
  %v203 = vpack.c.b16 %v173, %v172
  %v204 = vpack.c.b16 %v175, %v174
  %v205 = vpack.c.b16 %v177, %v176
  %v206 = vpack.c.b16 %v179, %v178
  %v207 = vpack.c.b16 %v181, %v180
  %v208 = vpack.c.b16 %v183, %v182
  %v209 = vpack.c.b16 %v184, %v184
  %v251 = vunpack.c.l.b16 %v64
  %v252 = vunpack.c.l.b16 %v65
  %v253 = vunpack.c.l.b16 %v66
  %v254 = vunpack.c.l.b16 %v67
  %v255 = vunpack.c.l.b16 %v68
  %v256 = vunpack.c.l.b16 %v69
  %v257 = vunpack.c.l.b16 %v70
  %v258 = vunpack.c.l.b16 %v71
  %v259 = vunpack.c.l.b16 %v72
  %v260 = vunpack.c.l.b16 %v73
  %v261 = vunpack.c.l.b16 %v74
  %v262 = vunpack.c.l.b16 %v75
  %v263 = vunpack.c.l.b16 %v76
  %v264 = vunpack.c.l.b16 %v77
  %v265 = vunpack.c.l.b16 %v78
  %v266 = vunpack.c.l.b16 %v79
  %v267 = vpack.c.b16 %v252, %v251
  %v268 = vpack.c.b16 %v254, %v253
  %v269 = vpack.c.b16 %v256, %v255
  %v270 = vpack.c.b16 %v258, %v257
  %v271 = vpack.c.b16 %v260, %v259
  %v272 = vpack.c.b16 %v262, %v261
  %v273 = vpack.c.b16 %v264, %v263
  %v274 = vpack.c.b16 %v266, %v265
  %283 = vmatprep.subr.bf16.mxu0 0
  %284 = vmatpush1.bf16.msra.mxu0 %v274
  %285 = vmatprep.subr.bf16.mxu0 0
  %286 = vmatpush1.bf16.msra.mxu0 %v273
  %287 = vmatprep.subr.bf16.mxu0 0
  %288 = vmatpush1.bf16.msra.mxu0 %v272
  %289 = vmatprep.subr.bf16.mxu0 0
  %290 = vmatpush1.bf16.msra.mxu0 %v271
  %291 = vmatprep.subr.bf16.mxu0 0
  %292 = vmatpush1.bf16.msra.mxu0 %v270
  %293 = vmatprep.subr.bf16.mxu0 0
  %294 = vmatpush1.bf16.msra.mxu0 %v269
  %295 = vmatprep.subr.bf16.mxu0 0
  %296 = vmatpush1.bf16.msra.mxu0 %v268
  %297 = vmatprep.subr.bf16.mxu0 0
  %298 = vmatpush1.bf16.msra.mxu0 %v267
  %299 = vmatprep.subr.bf16.mxu0 0
  %300 = vmatpush2.bf16.msra.mxu0 0
  %301 = vmatprep.subr.bf16.mxu0 0
  %302 = vmatpush2.bf16.msra.mxu0 0
  %303 = vmatprep.subr.bf16.mxu0 0
  %304 = vmatpush2.bf16.msra.mxu0 0
  %305 = vmatprep.subr.bf16.mxu0 0
  %306 = vmatpush2.bf16.msra.mxu0 0
  %307 = vmatprep.subr.bf16.mxu0 0
  %308 = vmatpush2.bf16.msra.mxu0 0
  %309 = vmatprep.subr.bf16.mxu0 0
  %310 = vmatpush2.bf16.msra.mxu0 0
  %311 = vmatprep.subr.bf16.mxu0 0
  %312 = vmatpush2.bf16.msra.mxu0 0
  %313 = vmatprep.subr.bf16.mxu0 0
  %314 = vmatpush2.bf16.msra.mxu0 0
  %315 = vmatprep.mubr.bf16.mxu0 0
  %316 = vmatmul.mubr.bf16.gmra.mxu0 %v185
  %v317 = vpop.f32.mrf.mxu0
  %v318 = vadd.f32 %v85, %v317
  %v319 = vpop.f32.mrf.mxu0
  %v320 = vpop.f32.mrf.mxu0
  %v321 = vadd.f32 %v85, %v320
  %v322 = vpop.f32.mrf.mxu0
  %323 = vmatprep.mubr.bf16.mxu0 0
  %324 = vmatmul.mubr.bf16.gmra.mxu0 %v186
  %v325 = vpop.f32.mrf.mxu0
  %v326 = vadd.f32 %v85, %v325
  %v327 = vpop.f32.mrf.mxu0
  %v328 = vpop.f32.mrf.mxu0
  %v329 = vadd.f32 %v85, %v328
  %v330 = vpop.f32.mrf.mxu0
  %331 = vmatprep.mubr.bf16.mxu0 0
  %332 = vmatmul.mubr.bf16.gmra.mxu0 %v187
  %v333 = vpop.f32.mrf.mxu0
  %v334 = vadd.f32 %v85, %v333
  %v335 = vpop.f32.mrf.mxu0
  %v336 = vpop.f32.mrf.mxu0
  %v337 = vadd.f32 %v85, %v336
  %v338 = vpop.f32.mrf.mxu0
  %339 = vmatprep.mubr.bf16.mxu0 0
  %340 = vmatmul.mubr.bf16.gmra.mxu0 %v188
  %v341 = vpop.f32.mrf.mxu0
  %v342 = vadd.f32 %v85, %v341
  %v343 = vpop.f32.mrf.mxu0
  %v344 = vpop.f32.mrf.mxu0
  %v345 = vadd.f32 %v85, %v344
  %v346 = vpop.f32.mrf.mxu0
  %347 = vmatprep.mubr.bf16.mxu0 0
  %348 = vmatmul.mubr.bf16.gmra.mxu0 %v189
  %v349 = vpop.f32.mrf.mxu0
  %v350 = vadd.f32 %v85, %v349
  %v351 = vpop.f32.mrf.mxu0
  %v352 = vpop.f32.mrf.mxu0
  %v353 = vadd.f32 %v85, %v352
  %v354 = vpop.f32.mrf.mxu0
  %355 = vmatprep.mubr.bf16.mxu0 0
  %356 = vmatmul.mubr.bf16.gmra.mxu0 %v190
  %v357 = vpop.f32.mrf.mxu0
  %v358 = vadd.f32 %v85, %v357
  %v359 = vpop.f32.mrf.mxu0
  %v360 = vpop.f32.mrf.mxu0
  %v361 = vadd.f32 %v85, %v360
  %v362 = vpop.f32.mrf.mxu0
  %363 = vmatprep.mubr.bf16.mxu0 0
  %364 = vmatmul.mubr.bf16.gmra.mxu0 %v191
  %v365 = vpop.f32.mrf.mxu0
  %v366 = vadd.f32 %v85, %v365
  %v367 = vpop.f32.mrf.mxu0
  %v368 = vpop.f32.mrf.mxu0
  %v369 = vadd.f32 %v85, %v368
  %v370 = vpop.f32.mrf.mxu0
  %371 = vmatprep.mubr.bf16.mxu0 0
  %372 = vmatmul.mubr.bf16.gmra.mxu0 %v192
  %v373 = vpop.f32.mrf.mxu0
  %v374 = vadd.f32 %v85, %v373
  %v375 = vpop.f32.mrf.mxu0
  %v376 = vpop.f32.mrf.mxu0
  %v377 = vadd.f32 %v85, %v376
  %v378 = vpop.f32.mrf.mxu0
  %379 = vmatprep.mubr.bf16.mxu0 0
  %380 = vmatmul.mubr.bf16.gmra.mxu0 %v193
  %v381 = vpop.f32.mrf.mxu0
  %v382 = vadd.f32 %v85, %v381
  %v383 = vpop.f32.mrf.mxu0
  %v384 = vpop.f32.mrf.mxu0
  %v385 = vadd.f32 %v85, %v384
  %v386 = vpop.f32.mrf.mxu0
  %387 = vmatprep.mubr.bf16.mxu0 0
  %388 = vmatmul.mubr.bf16.gmra.mxu0 %v194
  %v389 = vpop.f32.mrf.mxu0
  %v390 = vadd.f32 %v85, %v389
  %v391 = vpop.f32.mrf.mxu0
  %v392 = vpop.f32.mrf.mxu0
  %v393 = vadd.f32 %v85, %v392
  %v394 = vpop.f32.mrf.mxu0
  %395 = vmatprep.mubr.bf16.mxu0 0
  %396 = vmatmul.mubr.bf16.gmra.mxu0 %v195
  %v397 = vpop.f32.mrf.mxu0
  %v398 = vadd.f32 %v85, %v397
  %v399 = vpop.f32.mrf.mxu0
  %v400 = vpop.f32.mrf.mxu0
  %v401 = vadd.f32 %v85, %v400
  %v402 = vpop.f32.mrf.mxu0
  %403 = vmatprep.mubr.bf16.mxu0 0
  %404 = vmatmul.mubr.bf16.gmra.mxu0 %v196
  %v405 = vpop.f32.mrf.mxu0
  %v406 = vadd.f32 %v85, %v405
  %v407 = vpop.f32.mrf.mxu0
  %v408 = vpop.f32.mrf.mxu0
  %v409 = vadd.f32 %v85, %v408
  %v410 = vpop.f32.mrf.mxu0
  %411 = vmatprep.mubr.bf16.mxu0 0
  %412 = vmatmul.mubr.bf16.gmra.mxu0 %v197
  %v413 = vpop.f32.mrf.mxu0
  %v414 = vadd.f32 %v85, %v413
  %v415 = vpop.f32.mrf.mxu0
  %v416 = vpop.f32.mrf.mxu0
  %v417 = vadd.f32 %v85, %v416
  %v418 = vpop.f32.mrf.mxu0
  %419 = vmatprep.mubr.bf16.mxu0 0
  %420 = vmatmul.mubr.bf16.gmra.mxu0 %v198
  %v421 = vpop.f32.mrf.mxu0
  %v422 = vadd.f32 %v85, %v421
  %v423 = vpop.f32.mrf.mxu0
  %v424 = vpop.f32.mrf.mxu0
  %v425 = vadd.f32 %v85, %v424
  %v426 = vpop.f32.mrf.mxu0
  %427 = vmatprep.mubr.bf16.mxu0 0
  %428 = vmatmul.mubr.bf16.gmra.mxu0 %v199
  %v429 = vpop.f32.mrf.mxu0
  %v430 = vadd.f32 %v85, %v429
  %v431 = vpop.f32.mrf.mxu0
  %v432 = vpop.f32.mrf.mxu0
  %v433 = vadd.f32 %v85, %v432
  %v434 = vpop.f32.mrf.mxu0
  %435 = vmatprep.mubr.bf16.mxu0 0
  %436 = vmatmul.mubr.bf16.gmra.mxu0 %v200
  %v437 = vpop.f32.mrf.mxu0
  %v438 = vadd.f32 %v85, %v437
  %v439 = vpop.f32.mrf.mxu0
  %v440 = vpop.f32.mrf.mxu0
  %v441 = vadd.f32 %v85, %v440
  %v442 = vpop.f32.mrf.mxu0
  %443 = vmatprep.mubr.bf16.mxu0 0
  %444 = vmatmul.mubr.bf16.gmra.mxu0 %v201
  %v445 = vpop.f32.mrf.mxu0
  %v446 = vadd.f32 %v85, %v445
  %v447 = vpop.f32.mrf.mxu0
  %v448 = vpop.f32.mrf.mxu0
  %v449 = vadd.f32 %v85, %v448
  %v450 = vpop.f32.mrf.mxu0
  %451 = vmatprep.mubr.bf16.mxu0 0
  %452 = vmatmul.mubr.bf16.gmra.mxu0 %v202
  %v453 = vpop.f32.mrf.mxu0
  %v454 = vadd.f32 %v85, %v453
  %v455 = vpop.f32.mrf.mxu0
  %v456 = vpop.f32.mrf.mxu0
  %v457 = vadd.f32 %v85, %v456
  %v458 = vpop.f32.mrf.mxu0
  %459 = vmatprep.mubr.bf16.mxu0 0
  %460 = vmatmul.mubr.bf16.gmra.mxu0 %v203
  %v461 = vpop.f32.mrf.mxu0
  %v462 = vadd.f32 %v85, %v461
  %v463 = vpop.f32.mrf.mxu0
  %v464 = vpop.f32.mrf.mxu0
  %v465 = vadd.f32 %v85, %v464
  %v466 = vpop.f32.mrf.mxu0
  %467 = vmatprep.mubr.bf16.mxu0 0
  %468 = vmatmul.mubr.bf16.gmra.mxu0 %v204
  %v469 = vpop.f32.mrf.mxu0
  %v470 = vadd.f32 %v85, %v469
  %v471 = vpop.f32.mrf.mxu0
  %v472 = vpop.f32.mrf.mxu0
  %v473 = vadd.f32 %v85, %v472
  %v474 = vpop.f32.mrf.mxu0
  %475 = vmatprep.mubr.bf16.mxu0 0
  %476 = vmatmul.mubr.bf16.gmra.mxu0 %v205
  %v477 = vpop.f32.mrf.mxu0
  %v478 = vadd.f32 %v85, %v477
  %v479 = vpop.f32.mrf.mxu0
  %v480 = vpop.f32.mrf.mxu0
  %v481 = vadd.f32 %v85, %v480
  %v482 = vpop.f32.mrf.mxu0
  %483 = vmatprep.mubr.bf16.mxu0 0
  %484 = vmatmul.mubr.bf16.gmra.mxu0 %v206
  %v485 = vpop.f32.mrf.mxu0
  %v486 = vadd.f32 %v85, %v485
  %v487 = vpop.f32.mrf.mxu0
  %v488 = vpop.f32.mrf.mxu0
  %v489 = vadd.f32 %v85, %v488
  %v490 = vpop.f32.mrf.mxu0
  %491 = vmatprep.mubr.bf16.mxu0 0
  %492 = vmatmul.mubr.bf16.gmra.mxu0 %v207
  %v493 = vpop.f32.mrf.mxu0
  %v494 = vadd.f32 %v85, %v493
  %v495 = vpop.f32.mrf.mxu0
  %v496 = vpop.f32.mrf.mxu0
  %v497 = vadd.f32 %v85, %v496
  %v498 = vpop.f32.mrf.mxu0
  %499 = vmatprep.mubr.bf16.mxu0 0
  %500 = vmatmul.mubr.bf16.gmra.mxu0 %v208
  %v501 = vpop.f32.mrf.mxu0
  %v502 = vadd.f32 %v85, %v501
  %v503 = vpop.f32.mrf.mxu0
  %v504 = vpop.f32.mrf.mxu0
  %v505 = vadd.f32 %v85, %v504
  %v506 = vpop.f32.mrf.mxu0
  %507 = vmatprep.mubr.bf16.mxu0 0
  %508 = vmatmul.mubr.bf16.gmra.mxu0 %v209
  %v509 = vpop.f32.mrf.mxu0
  %v510 = vadd.f32 %v85, %v509
  %v511 = vpop.f32.mrf.mxu0
  %v512 = vpop.f32.mrf.mxu0
  %v513 = vpop.f32.mrf.mxu0
  %514 = vdwg.mxu0
  %515 = vst [vmem:[%s3] sm:$0xff] %v318
  %516 = vst [vmem:[%s3 + $0x8] sm:$0xff] %v321
  %517 = vst [vmem:[%s3 + $0x10] sm:$0xff] %v326
  %518 = vst [vmem:[%s3 + $0x18] sm:$0xff] %v329
  %519 = vst [vmem:[%s3 + $0x20] sm:$0xff] %v334
  %520 = vst [vmem:[%s3 + $0x28] sm:$0xff] %v337
  %521 = vst [vmem:[%s3 + $0x30] sm:$0xff] %v342
  %522 = vst [vmem:[%s3 + $0x38] sm:$0xff] %v345
  %523 = vst [vmem:[%s3 + $0x40] sm:$0xff] %v350
  %524 = vst [vmem:[%s3 + $0x48] sm:$0xff] %v353
  %525 = vst [vmem:[%s3 + $0x50] sm:$0xff] %v358
  %526 = vst [vmem:[%s3 + $0x58] sm:$0xff] %v361
  %527 = vst [vmem:[%s3 + $0x60] sm:$0xff] %v366
  %528 = vst [vmem:[%s3 + $0x68] sm:$0xff] %v369
  %529 = vst [vmem:[%s3 + $0x70] sm:$0xff] %v374
  %530 = vst [vmem:[%s3 + $0x78] sm:$0xff] %v377
  %531 = vst [vmem:[%s3 + $0x80] sm:$0xff] %v382
  %532 = vst [vmem:[%s3 + $0x88] sm:$0xff] %v385
  %533 = vst [vmem:[%s3 + $0x90] sm:$0xff] %v390
  %534 = vst [vmem:[%s3 + $0x98] sm:$0xff] %v393
  %535 = vst [vmem:[%s3 + $0xa0] sm:$0xff] %v398
  %536 = vst [vmem:[%s3 + $0xa8] sm:$0xff] %v401
  %537 = vst [vmem:[%s3 + $0xb0] sm:$0xff] %v406
  %538 = vst [vmem:[%s3 + $0xb8] sm:$0xff] %v409
  %539 = vst [vmem:[%s3 + $0xc0] sm:$0xff] %v414
  %540 = vst [vmem:[%s3 + $0xc8] sm:$0xff] %v417
  %541 = vst [vmem:[%s3 + $0xd0] sm:$0xff] %v422
  %542 = vst [vmem:[%s3 + $0xd8] sm:$0xff] %v425
  %543 = vst [vmem:[%s3 + $0xe0] sm:$0xff] %v430
  %544 = vst [vmem:[%s3 + $0xe8] sm:$0xff] %v433
  %545 = vst [vmem:[%s3 + $0xf0] sm:$0xff] %v438
  %546 = vst [vmem:[%s3 + $0xf8] sm:$0xff] %v441
  %547 = vst [vmem:[%s3 + $0x100] sm:$0xff] %v446
  %548 = vst [vmem:[%s3 + $0x108] sm:$0xff] %v449
  %549 = vst [vmem:[%s3 + $0x110] sm:$0xff] %v454
  %550 = vst [vmem:[%s3 + $0x118] sm:$0xff] %v457
  %551 = vst [vmem:[%s3 + $0x120] sm:$0xff] %v462
  %552 = vst [vmem:[%s3 + $0x128] sm:$0xff] %v465
  %553 = vst [vmem:[%s3 + $0x130] sm:$0xff] %v470
  %554 = vst [vmem:[%s3 + $0x138] sm:$0xff] %v473
  %555 = vst [vmem:[%s3 + $0x140] sm:$0xff] %v478
  %556 = vst [vmem:[%s3 + $0x148] sm:$0xff] %v481
  %557 = vst [vmem:[%s3 + $0x150] sm:$0xff] %v486
  %558 = vst [vmem:[%s3 + $0x158] sm:$0xff] %v489
  %559 = vst [vmem:[%s3 + $0x160] sm:$0xff] %v494
  %560 = vst [vmem:[%s3 + $0x168] sm:$0xff] %v497
  %561 = vst [vmem:[%s3 + $0x170] sm:$0xff] %v502
  %562 = vst [vmem:[%s3 + $0x178] sm:$0xff] %v505
  %563 = vst [vmem:[%s3 + $0x180] sm:$0xff] %v510
  // Predicated region
  $region14: #{test_concat_many_forward.1} parent=0 // pred_check
    _
  $region15: #{test_concat_many_forward.1} parent=0 // pred_check_branch
    %565 = sbr.rel (0) target = $region17
  $region16: #{test_concat_many_forward.1} parent=0 // pred_region
    _
  $region17: #{test_concat_many_forward.1} parent=0 // pred_fallthru
    _
  // Predicated region
  $region18: #{test_concat_many_forward.1} parent=0 // pred_check
    _
  $region19: #{test_concat_many_forward.1} parent=0 // pred_check_branch
    %567 = sbr.rel (0) target = $region21
  $region20: #{test_concat_many_forward.1} parent=0 // pred_region
    _
  $region21: #{test_concat_many_forward.1} parent=0 // pred_fallthru
    _

</llo_original>
